<compile_context>
chip_gen: v7x
topology: tpu7x:2x2x1
jax: 0.10.0
libtpu: 0.0.40
codegen_flags: <defaults>
</compile_context>

<pallas_src>
import functools

import jax
import jax.numpy as jnp
from jax.experimental import pallas as pl
from jax.experimental.pallas import tpu as pltpu

ESP = 1e-12

_LANE = 128
_SUBLANE = 8
_MAX_BLOCK_ROWS = 4096  # (4096, 128) f32 block = 2 MiB/buffer; fits all VMEMs


def _fidelity_kernel(p_ref, g_ref, out_ref, *, n_valid, steps_per_half,
                     has_pad):
    c = pl.program_id(0)   # parallel (megacore) axis
    i = pl.program_id(1)   # reduction axis

    @pl.when(i == 0)
    def _():
        out_ref[...] = jnp.zeros_like(out_ref)

    p = p_ref[...].astype(jnp.float32)
    g = g_ref[...].astype(jnp.float32)
    loss = 1.0 - (jnp.sqrt(p * g + ESP) + jnp.sqrt((1.0 - p) * (1.0 - g) + ESP))

    def _accumulate(x):
        # Fold (block_rows, 128) -> (8, 128): pure vreg-wise VPU adds, lane
        # axis stays dense. Full cross-lane reduction happens once (wrapper).
        out_ref[...] += x.reshape(-1, _SUBLANE, _LANE).sum(axis=0)

    if not has_pad:
        # Static fast path: N exactly fills the tiling, no mask needed at all.
        _accumulate(loss)
    else:
        block_rows = loss.shape[0]
        block_elems = block_rows * _LANE
        # Note: int32 index math — fine for < 2**31 elements.
        block_start = (c * steps_per_half + i) * block_elems
        is_tail = block_start + block_elems > n_valid

        @pl.when(jnp.logical_not(is_tail))
        def _():
            _accumulate(loss)

        @pl.when(is_tail)
        def _():
            # In-kernel validity mask (replaces a full-size HBM mask stream);
            # only built for blocks that actually touch padding.
            row = jax.lax.broadcasted_iota(jnp.int32, loss.shape, 0)
            col = jax.lax.broadcasted_iota(jnp.int32, loss.shape, 1)
            idx = block_start + row * _LANE + col
            _accumulate(jnp.where(idx < n_valid, loss, 0.0))


def fidelity_loss(p, g, *, max_block_rows=_MAX_BLOCK_ROWS):
    """Pallas TPU implementation of Fidelity_Loss.forward(p, g). Returns scalar f32."""
    p_flat = jnp.reshape(p, (-1,))
    g_flat = jnp.reshape(g, (-1,))
    n = p_flat.shape[0]
    assert g_flat.shape[0] == n, "p and g must have the same number of elements"

    max_block_rows = max(_SUBLANE, (max_block_rows // _SUBLANE) * _SUBLANE)

    # Tiling: (rows, 128) with block = (block_rows, 128), block_rows % 8 == 0.
    rows_needed = -(-n // _LANE)
    rows_aligned = -(-rows_needed // _SUBLANE) * _SUBLANE

    # Evenly split rows over the grid so padding stays at a few sublane-rows.
    num_blocks = -(-rows_aligned // max_block_rows)
    par = 2 if num_blocks >= 2 else 1      # shard reduction over 2 TCs on v7x
    num_blocks = -(-num_blocks // par) * par
    steps_per_half = num_blocks // par
    per_block = -(-rows_aligned // num_blocks)
    block_rows = -(-per_block // _SUBLANE) * _SUBLANE

    total_rows = num_blocks * block_rows
    pad = total_rows * _LANE - n
    has_pad = pad > 0

    # Keep native dtype (no wrapper-side upcast); upcast happens in-kernel.
    if has_pad:
        p_flat = jnp.pad(p_flat, (0, pad))
        g_flat = jnp.pad(g_flat, (0, pad))
    p2 = p_flat.reshape(total_rows, _LANE)
    g2 = g_flat.reshape(total_rows, _LANE)

    in_spec = pl.BlockSpec((block_rows, _LANE),
                           lambda c, i: (c * steps_per_half + i, 0))
    # Per-half (8, 128) partial-sum block (lane-dense, 8-sublane aligned).
    out_spec = pl.BlockSpec((_SUBLANE, _LANE), lambda c, i: (c, 0))

    kernel = functools.partial(
        _fidelity_kernel, n_valid=n, steps_per_half=steps_per_half,
        has_pad=has_pad)

    partial_sums = pl.pallas_call(
        kernel,
        out_shape=jax.ShapeDtypeStruct((par * _SUBLANE, _LANE), jnp.float32),
        grid_spec=pltpu.PrefetchScalarGridSpec(
            num_scalar_prefetch=0,
            grid=(par, steps_per_half),
            in_specs=[in_spec, in_spec],
            out_specs=out_spec,
        ),
        compiler_params=pltpu.CompilerParams(
            dimension_semantics=("parallel", "arbitrary")),
    )(p2, g2)

    # Single cross-lane reduction + mean normalization (tiny, done in XLA).
    return jnp.sum(partial_sums) / jnp.float32(n)


def _reference(p, g):
    p = jnp.reshape(p, (-1, 1)).astype(jnp.float32)
    g = jnp.reshape(g, (-1, 1)).astype(jnp.float32)
    loss = 1.0 - (jnp.sqrt(p * g + ESP) + jnp.sqrt((1.0 - p) * (1.0 - g) + ESP))
    return jnp.mean(loss)


if __name__ == "__main__":
    key = jax.random.PRNGKey(0)
    kp, kg = jax.random.split(key)

    # Primary small test: probabilities in [0, 1], per-pixel prediction shape.
    shape = (2, 4, 16, 16)
    p = jax.random.uniform(kp, shape, dtype=jnp.float32)
    g = jax.random.uniform(kg, shape, dtype=jnp.float32)
    out = fidelity_loss(p, g)
    jax.block_until_ready(out)
    ref = _reference(p, g)
    assert jnp.allclose(out, ref, atol=1e-5, rtol=1e-5), (out, ref)

    # Exercise the in-kernel padding mask (N not a multiple of 128).
    p2 = jax.random.uniform(kp, (3, 5, 7), dtype=jnp.float32)
    g2 = jax.random.uniform(kg, (3, 5, 7), dtype=jnp.float32)
    out2 = fidelity_loss(p2, g2)
    jax.block_until_ready(out2)
    ref2 = _reference(p2, g2)
    assert jnp.allclose(out2, ref2, atol=1e-5, rtol=1e-5), (out2, ref2)

    # Exercise the multi-block + 2-way parallel reduction path on the same
    # small input by capping the block size (same math, more grid steps).
    out3 = fidelity_loss(p, g, max_block_rows=8)
    jax.block_until_ready(out3)
    assert jnp.allclose(out3, ref, atol=1e-5, rtol=1e-5), (out3, ref)

    # Multi-block + padding that spans more than one tail block.
    p4 = jax.random.uniform(kp, (3, 1000), dtype=jnp.float32)
    g4 = jax.random.uniform(kg, (3, 1000), dtype=jnp.float32)
    out4 = fidelity_loss(p4, g4, max_block_rows=8)
    jax.block_until_ready(out4)
    ref4 = _reference(p4, g4)
    assert jnp.allclose(out4, ref4, atol=1e-5, rtol=1e-5), (out4, ref4)

    # bf16 inputs streamed natively, upcast in-kernel.
    p5 = p.astype(jnp.bfloat16)
    g5 = g.astype(jnp.bfloat16)
    out5 = fidelity_loss(p5, g5)
    jax.block_until_ready(out5)
    ref5 = _reference(p5, g5)
    assert jnp.allclose(out5, ref5, atol=1e-5, rtol=1e-5), (out5, ref5)

    print("KERNEL_OK")
</pallas_src>

<mosaic_0001>
module attributes {stable_mosaic.version = 11 : i64} {
  func.func @_fidelity_kernel(%arg0: i32, %arg1: i32, %arg2: memref<16x128xf32, #tpu.memory_space<vmem>>, %arg3: memref<16x128xf32, #tpu.memory_space<vmem>>, %arg4: memref<8x128xf32, #tpu.memory_space<vmem>>) attributes {dimension_semantics = [#tpu.dimension_semantics<parallel>, #tpu.dimension_semantics<arbitrary>], iteration_bounds = array<i64: 1, 1>, scalar_prefetch = 0 : i64, scratch_operands = 0 : i64, tpu.core_type = #tpu.core_type<tc>, window_params = [{transform_indices = @transform_0, window_bounds = array<i64: 16, 128>}, {transform_indices = @transform_1, window_bounds = array<i64: 16, 128>}, {transform_indices = @transform_2, window_bounds = array<i64: 8, 128>}]} {
    %c0_i32 = arith.constant 0 : i32
    %0 = arith.cmpi eq, %arg1, %c0_i32 : i32
    %1 = arith.extui %0 : i1 to i32
    %c0_i32_0 = arith.constant 0 : i32
    %2 = arith.cmpi ne, %1, %c0_i32_0 : i32
    scf.if %2 {
      %cst_13 = arith.constant 0.000000e+00 : f32
      %25 = vector.broadcast %cst_13 : f32 to vector<8x128xf32>
      %c0_14 = arith.constant 0 : index
      %c0_15 = arith.constant 0 : index
      %26 = vector.load %arg4[%c0_14, %c0_15] : memref<8x128xf32, #tpu.memory_space<vmem>>, vector<8x128xf32>
      tpu.vector_store %arg4[%c0_14, %c0_15], %25 {strides = array<i32>} : memref<8x128xf32, #tpu.memory_space<vmem>>, vector<8x128xf32>,
    } else {
    }
    %c0 = arith.constant 0 : index
    %c0_1 = arith.constant 0 : index
    %3 = vector.load %arg2[%c0, %c0_1] : memref<16x128xf32, #tpu.memory_space<vmem>>, vector<16x128xf32>
    %c0_2 = arith.constant 0 : index
    %c0_3 = arith.constant 0 : index
    %4 = vector.load %arg3[%c0_2, %c0_3] : memref<16x128xf32, #tpu.memory_space<vmem>>, vector<16x128xf32>
    %5 = arith.mulf %3, %4 : vector<16x128xf32>
    %cst = arith.constant 9.99999996E-13 : f32
    %6 = vector.broadcast %cst : f32 to vector<16x128xf32>
    %7 = arith.addf %5, %6 : vector<16x128xf32>
    %8 = math.sqrt %7 : vector<16x128xf32>
    %cst_4 = arith.constant 1.000000e+00 : f32
    %9 = vector.broadcast %cst_4 : f32 to vector<16x128xf32>
    %10 = arith.subf %9, %3 : vector<16x128xf32>
    %cst_5 = arith.constant 1.000000e+00 : f32
    %11 = vector.broadcast %cst_5 : f32 to vector<16x128xf32>
    %12 = arith.subf %11, %4 : vector<16x128xf32>
    %13 = arith.mulf %10, %12 : vector<16x128xf32>
    %cst_6 = arith.constant 9.99999996E-13 : f32
    %14 = vector.broadcast %cst_6 : f32 to vector<16x128xf32>
    %15 = arith.addf %13, %14 : vector<16x128xf32>
    %16 = math.sqrt %15 : vector<16x128xf32>
    %17 = arith.addf %8, %16 : vector<16x128xf32>
    %cst_7 = arith.constant 1.000000e+00 : f32
    %18 = vector.broadcast %cst_7 : f32 to vector<16x128xf32>
    %19 = arith.subf %18, %17 : vector<16x128xf32>
    %c0_8 = arith.constant 0 : index
    %c0_9 = arith.constant 0 : index
    %20 = vector.load %arg4[%c0_8, %c0_9] : memref<8x128xf32, #tpu.memory_space<vmem>>, vector<8x128xf32>
    %21 = vector.shape_cast %19 : vector<16x128xf32> to vector<2x8x128xf32>
    %cst_10 = arith.constant dense<0.000000e+00> : vector<8x128xf32>
    %22 = vector.multi_reduction <add>, %21, %cst_10 [0] : vector<2x8x128xf32> to vector<8x128xf32>
    %23 = arith.addf %20, %22 : vector<8x128xf32>
    %c0_11 = arith.constant 0 : index
    %c0_12 = arith.constant 0 : index
    %24 = vector.load %arg4[%c0_11, %c0_12] : memref<8x128xf32, #tpu.memory_space<vmem>>, vector<8x128xf32>
    tpu.vector_store %arg4[%c0_11, %c0_12], %23 {strides = array<i32>} : memref<8x128xf32, #tpu.memory_space<vmem>>, vector<8x128xf32>,
    return
  }
  func.func @transform_0(%arg0: i32, %arg1: i32) -> (i32, i32) {
    %c1_i32 = arith.constant 1 : i32
    %0 = arith.muli %arg0, %c1_i32 : i32
    %1 = arith.addi %0, %arg1 : i32
    %c0_i32 = arith.constant 0 : i32
    %c0_i32_0 = arith.constant 0 : i32
    return %1, %c0_i32 : i32, i32
  }
  func.func @transform_1(%arg0: i32, %arg1: i32) -> (i32, i32) {
    %c1_i32 = arith.constant 1 : i32
    %0 = arith.muli %arg0, %c1_i32 : i32
    %1 = arith.addi %0, %arg1 : i32
    %c0_i32 = arith.constant 0 : i32
    %c0_i32_0 = arith.constant 0 : i32
    return %1, %c0_i32 : i32, i32
  }
  func.func @transform_2(%arg0: i32, %arg1: i32) -> (i32, i32) {
    %c0_i32 = arith.constant 0 : i32
    %c0_i32_0 = arith.constant 0 : i32
    return %arg0, %c0_i32 : i32, i32
  }
}

</mosaic_0001>

<llo_original>
// kernel: tpu_custom_call.1
$region0: #{tpu_custom_call.1}
  #allocation0 [shape = 'u32[]', space=smem, size = 0x4, offset = 0x4, fixed_abs, tag = 'smem constant byte address 0x4 - core index']
  #allocation1 [shape = 'u32[144,128]{1,0:T(1,128)}', space=vmem, size = 0x12000, scoped, tag = 'internal scratch']
  %s0 = inlined_call_operand.hbm [shape: f32[16,128], index: 0, kind: input, shape index: {}]
  %s1 = inlined_call_operand.hbm [shape: f32[16,128], index: 1, kind: input, shape index: {}]
  %s2 = inlined_call_operand.hbm [shape: f32[8,128], index: 2, kind: output, shape index: {}]
  %s3 = sld [smem:[#allocation0]]
  $region30: #{tpu_custom_call.1} parent=0
    _
  %s5 = ssub.s32 1, %s3
  %s6 = scalar_select 0, %s5, %s3
  $region1: #{tpu_custom_call.1} parent=0
    #allocation2 [shape = 'u8[8192]{0}', space=vmem, size = 0x2000, scoped, tag = 'input window, operand 0, single buffered']
    #allocation3 [shape = 's32[1]{0}', space=sflag, size = 0x4, scoped, tag = 'scoped memory for tpu_custom_call.1']
    #allocation4 [shape = 's32[1]{0}', space=sflag, size = 0x4, scoped, tag = 'scoped memory for tpu_custom_call.1']
    #allocation5 [shape = 'u8[8192]{0}', space=vmem, size = 0x2000, scoped, tag = 'input window, operand 1, single buffered']
    #allocation6 [shape = 's32[1]{0}', space=sflag, size = 0x4, scoped, tag = 'scoped memory for tpu_custom_call.1']
    #allocation7 [shape = 'u8[4096]{0}', space=vmem, size = 0x1000, scoped, tag = 'output window, operand 0, single buffered']
    %7 = vsyncpa [#allocation3], 0
    %8 = vsyncpa [#allocation6], 0
    %9 = vsyncpa [#allocation4], 0
    // Predicated region
    $region2: #{tpu_custom_call.1} parent=1 // pred_check
      _
    $region3: #{tpu_custom_call.1} parent=1 // pred_check_branch
      %11 = sbr.rel (0) target = $region5
    $region4: #{tpu_custom_call.1} parent=1 // pred_region
      %s12 = sadd.s32 0, 0
      %s13 = smul.u32 2, %s12
      %s15 = ssub.s32 256, 256
      %16 = vsyncadd [#allocation3], %s15
      %s17 = smul.addr %s13, 128
      %s18 = scalar_lea.hbm %s0, %s17
      %s19 = sshll.u32 [#allocation2], 4
      %s20 = int_to_ptr.vmem [resolvable:$true] %s19
      %25 = dma.hbm_to_vmem [thread:$0]  %s18, 256, %s20, [#allocation3], 128, 128, 8
    $region5: #{tpu_custom_call.1} parent=1 // pred_fallthru
      _
    // Predicated region
    $region6: #{tpu_custom_call.1} parent=1 // pred_check
      _
    $region7: #{tpu_custom_call.1} parent=1 // pred_check_branch
      %27 = sbr.rel (0) target = $region9
    $region8: #{tpu_custom_call.1} parent=1 // pred_region
      %s28 = sadd.s32 0, 0
      %s29 = smul.u32 2, %s28
      %s31 = ssub.s32 256, 256
      %32 = vsyncadd [#allocation6], %s31
      %s33 = smul.addr %s29, 128
      %s34 = scalar_lea.hbm %s1, %s33
      %s35 = sshll.u32 [#allocation5], 4
      %s36 = int_to_ptr.vmem [resolvable:$true] %s35
      %41 = dma.hbm_to_vmem [thread:$0]  %s34, 256, %s36, [#allocation6], 128, 128, 8
    $region9: #{tpu_custom_call.1} parent=1 // pred_fallthru
      _
    // Predicated region
    $region10: #{tpu_custom_call.1} parent=1 // pred_check
      _
    $region11: #{tpu_custom_call.1} parent=1 // pred_check_branch
      %43 = sbr.rel (0) target = $region13
    $region12: #{tpu_custom_call.1} parent=1 // pred_region
      %44 = dma.done [#allocation3], 256
    $region13: #{tpu_custom_call.1} parent=1 // pred_fallthru
      _
    // Predicated region
    $region14: #{tpu_custom_call.1} parent=1 // pred_check
      _
    $region15: #{tpu_custom_call.1} parent=1 // pred_check_branch
      %46 = sbr.rel (0) target = $region17
    $region16: #{tpu_custom_call.1} parent=1 // pred_region
      %47 = dma.done [#allocation6], 256
    $region17: #{tpu_custom_call.1} parent=1 // pred_fallthru
      _
    %s48 = sadd.s32 0, 0
    %s49 = smul.u32 2, %s48
    %s50 = sadd.s32 0, 0
    %s51 = smul.u32 2, %s50
    %p52 = scmp.eq.s32.totalorder 0, 0
    // Predicated region
    $region18: #{tpu_custom_call.1} parent=1 // pred_check
      %p53 = pneg %p52
    $region19: #{tpu_custom_call.1} parent=1 // pred_check_branch
      %55 = sbr.rel (%p53) target = $region21
    $region20: #{tpu_custom_call.1} parent=1 // pred_region
      %56 = vst [vmem:[#allocation7] sm:$0xff] 0.0
    $region21: #{tpu_custom_call.1} parent=1 // pred_fallthru
      _
    %v57 = vld [vmem:[#allocation2] sm:$0xff]
    %v58 = vld [vmem:[#allocation2 + $0x8] sm:$0xff]
    %v59 = vld [vmem:[#allocation5] sm:$0xff]
    %v60 = vld [vmem:[#allocation5 + $0x8] sm:$0xff]
    %v61 = vmul.f32 %v57, %v59
    %v62 = vmul.f32 %v58, %v60
    %v63 = vadd.f32 %v61, 1e-12
    %v64 = vadd.f32 %v62, 1e-12
    %v65 = vrsqrt.pop %v63
    %v66 = vmul.f32 %v63, %v65
    %vm67 = vcmp.eq.f32.partialorder %v63, inf
    %v68 = vsel %vm67, %v63, %v66
    %vm69 = vcmp.eq.f32.partialorder %v63, 0.0
    %v70 = vand.u32 %v63, 2147483648
    %v71 = vsel %vm69, %v70, %v68
    %v72 = vrsqrt.pop %v64
    %v73 = vmul.f32 %v64, %v72
    %vm74 = vcmp.eq.f32.partialorder %v64, inf
    %v75 = vsel %vm74, %v64, %v73
    %vm76 = vcmp.eq.f32.partialorder %v64, 0.0
    %v77 = vand.u32 %v64, 2147483648
    %v78 = vsel %vm76, %v77, %v75
    %v79 = vsub.f32 1.0, %v57
    %v80 = vsub.f32 1.0, %v58
    %v81 = vsub.f32 1.0, %v59
    %v82 = vsub.f32 1.0, %v60
    %v83 = vmul.f32 %v79, %v81
    %v84 = vmul.f32 %v80, %v82
    %v85 = vadd.f32 %v83, 1e-12
    %v86 = vadd.f32 %v84, 1e-12
    %v87 = vrsqrt.pop %v85
    %v88 = vmul.f32 %v85, %v87
    %vm89 = vcmp.eq.f32.partialorder %v85, inf
    %v90 = vsel %vm89, %v85, %v88
    %vm91 = vcmp.eq.f32.partialorder %v85, 0.0
    %v92 = vand.u32 %v85, 2147483648
    %v93 = vsel %vm91, %v92, %v90
    %v94 = vrsqrt.pop %v86
    %v95 = vmul.f32 %v86, %v94
    %vm96 = vcmp.eq.f32.partialorder %v86, inf
    %v97 = vsel %vm96, %v86, %v95
    %vm98 = vcmp.eq.f32.partialorder %v86, 0.0
    %v99 = vand.u32 %v86, 2147483648
    %v100 = vsel %vm98, %v99, %v97
    %v101 = vadd.f32 %v71, %v93
    %v102 = vadd.f32 %v78, %v100
    %v103 = vsub.f32 1.0, %v101
    %v104 = vsub.f32 1.0, %v102
    %v105 = vld [vmem:[#allocation7] sm:$0xff]
    %v106 = vadd.f32 %v103, %v104
    %v107 = vadd.f32 %v105, %v106
    %108 = vst [vmem:[#allocation7] sm:$0xff] %v107
    // Predicated region
    $region22: #{tpu_custom_call.1} parent=1 // pred_check
      _
    $region23: #{tpu_custom_call.1} parent=1 // pred_check_branch
      %110 = sbr.rel (0) target = $region25
    $region24: #{tpu_custom_call.1} parent=1 // pred_region
      %s112 = ssub.s32 128, 128
      %113 = vsyncadd [#allocation4], %s112
      %s115 = sshll.u32 [#allocation7], 4
      %s116 = int_to_ptr.vmem [resolvable:$true] %s115
      %118 = dma.vmem_to_hbm [thread:$0]  %s116, 128, %s2, [#allocation4]
    $region25: #{tpu_custom_call.1} parent=1 // pred_fallthru
      _
    // Predicated region
    $region26: #{tpu_custom_call.1} parent=1 // pred_check
      _
    $region27: #{tpu_custom_call.1} parent=1 // pred_check_branch
      %120 = sbr.rel (0) target = $region29
    $region28: #{tpu_custom_call.1} parent=1 // pred_region
      %121 = dma.done [#allocation4], 128
    $region29: #{tpu_custom_call.1} parent=1 // pred_fallthru
      _
    %122 = vsyncpa [#allocation3], 1
    %123 = vsyncpa [#allocation6], 1
    %124 = vsyncpa [#allocation4], 1

</llo_original>
